<compile_context>
chip_gen: v7x
topology: tpu7x:2x2x1
jax: 0.10.0
libtpu: 0.0.40
codegen_flags: <defaults>
</compile_context>

<pallas_src>
import functools

import jax
import jax.numpy as jnp
from jax.experimental import pallas as pl
from jax.experimental.pallas import tpu as pltpu


def _round_up(x, m):
    return ((x + m - 1) // m) * m


def _pipeline_mode_supported():
    """Targeted probe: does this JAX build accept pipeline_mode=pl.Buffered?"""
    if not hasattr(pl, "Buffered"):
        return False
    try:
        pl.BlockSpec((8, 128), lambda i: (0, 0), pipeline_mode=pl.Buffered(1))
        return True
    except TypeError:
        return False


def bert_output_kernel(h_ref, res_ref, w_ref, p_ref, o_ref, *, eps):
    """One row-tile of: LayerNorm(dense(h) + bias + residual)."""
    # h_ref:   (tm, I)  intermediate activations, native dtype (f32 or bf16)
    # res_ref: (tm, H)  residual rows (input_tensor), native dtype
    # w_ref:   (I, H)   dense weight in matmul dtype (bf16)
    # p_ref:   (3, H)   row 0 = dense bias, row 1 = LN gamma, row 2 = LN beta (f32)
    # o_ref:   (tm, H)
    lhs = h_ref[...]
    if lhs.dtype != w_ref.dtype:
        lhs = lhs.astype(w_ref.dtype)           # in-VMEM cast: free (VPU slack)
    x = jnp.dot(lhs, w_ref[...], preferred_element_type=jnp.float32)
    x = x + p_ref[0:1, :]
    # TODO(synk): dropout is identity in eval mode; training-mode dropout
    # (pltpu.prng_random_bits mask) intentionally not implemented.
    x = x + res_ref[...].astype(jnp.float32)

    # LayerNorm over the hidden axis, all in f32, one-pass variance (clamped).
    mean = jnp.mean(x, axis=-1, keepdims=True)
    mean_sq = jnp.mean(x * x, axis=-1, keepdims=True)
    var = jnp.maximum(mean_sq - mean * mean, 0.0)
    normed = (x - mean) * jax.lax.rsqrt(var + eps)
    y = normed * p_ref[1:2, :] + p_ref[2:3, :]
    o_ref[...] = y.astype(o_ref.dtype)


def bert_output(hidden_states, input_tensor, w, b, gamma, beta, *,
                eps=1e-12, tm=None, matmul_dtype=jnp.bfloat16):
    """hidden_states: [B, S, I], input_tensor: [B, S, H] -> [B, S, H]."""
    B, S, I = hidden_states.shape
    H = input_tensor.shape[-1]
    M = B * S
    out_dtype = hidden_states.dtype
    h_bytes = jnp.dtype(hidden_states.dtype).itemsize
    r_bytes = jnp.dtype(input_tensor.dtype).itemsize
    w_bytes = jnp.dtype(matmul_dtype).itemsize
    out_bytes = jnp.dtype(out_dtype).itemsize

    # ---- generation-aware VMEM budget --------------------------------------
    try:
        vmem_cap = int(pltpu.get_tpu_info().vmem_capacity_bytes)
    except Exception:  # hardware query unavailable -> assume smallest (v7x, 64 MiB)
        vmem_cap = 64 * 1024 * 1024
    if vmem_cap >= 96 * 1024 * 1024:          # v5e / v6e: 128 MiB physical VMEM
        vmem_budget_bytes = 96 * 1024 * 1024
        tm_cap = 1024
    else:                                     # v7x: 64 MiB physical VMEM per TC
        vmem_budget_bytes = 48 * 1024 * 1024
        tm_cap = 512

    # ---- tile-size selection ------------------------------------------------
    # Resident (single-buffered) blocks: weight + packed params.
    fixed_bytes = I * H * w_bytes + 2 * 3 * H * 4
    # Per row of the tile: double-buffered activation / residual / output
    # blocks plus a rough allowance for the f32 intermediates in the kernel.
    per_row_bytes = 2 * I * h_bytes + 2 * H * r_bytes + 2 * H * out_bytes + 6 * H * 4
    if tm is None:
        avail = vmem_budget_bytes - fixed_bytes
        tm = max(128, min(tm_cap, (avail // per_row_bytes) // 128 * 128))
    tm = min(tm, _round_up(M, 8))             # don't tile past the row count
    # v7x has 2 TensorCores: guarantee at least 2 grid steps when worthwhile.
    if M > 128 and pl.cdiv(M, tm) < 2:
        tm = _round_up(pl.cdiv(M, 2), 8)
    grid_m = pl.cdiv(M, tm)

    # ---- operand prep (no padding, no casts on the big streams) -------------
    h2 = hidden_states.reshape(M, I)                       # native dtype
    r2 = input_tensor.reshape(M, H)                        # native dtype
    w2 = w.astype(matmul_dtype)                            # resident, tiny
    params = jnp.stack([b, gamma, beta]).astype(jnp.float32)   # (3, H)

    vmem_limit = int(min(0.85 * vmem_cap,
                         max(32 * 1024 * 1024,
                             1.3 * (fixed_bytes + tm * per_row_bytes))))
    cost = pl.CostEstimate(
        flops=2 * M * I * H + 10 * M * H,
        transcendentals=M,                    # one rsqrt per row
        bytes_accessed=(M * I * h_bytes + I * H * w_bytes
                        + M * H * r_bytes + M * H * out_bytes + 3 * H * 4),
    )
    kernel = functools.partial(bert_output_kernel, eps=eps)

    def build(resident_consts):
        # Constant-index blocks (weight, packed params) don't need double
        # buffering; a single buffer keeps big weights from burning VMEM.
        ckw = {"pipeline_mode": pl.Buffered(1)} if resident_consts else {}
        return pl.pallas_call(
            kernel,
            out_shape=jax.ShapeDtypeStruct((M, H), out_dtype),
            grid_spec=pltpu.PrefetchScalarGridSpec(
                num_scalar_prefetch=0,
                grid=(grid_m,),
                in_specs=[
                    pl.BlockSpec((tm, I), lambda i: (i, 0)),          # activations
                    pl.BlockSpec((tm, H), lambda i: (i, 0)),          # residual
                    pl.BlockSpec((I, H), lambda i: (0, 0), **ckw),    # weight
                    pl.BlockSpec((3, H), lambda i: (0, 0), **ckw),    # bias/gamma/beta
                ],
                out_specs=pl.BlockSpec((tm, H), lambda i: (i, 0)),
            ),
            compiler_params=pltpu.CompilerParams(
                # Rows are fully independent -> megacore-shard the row axis.
                dimension_semantics=("parallel",),
                vmem_limit_bytes=vmem_limit,
            ),
            cost_estimate=cost,
        )

    use_resident = _pipeline_mode_supported()
    try:
        out = build(use_resident)(h2, r2, w2, params)
    except pltpu.LoweringException:
        if not use_resident:
            raise
        # Only the pipeline_mode path gets a (targeted) fallback.
        out = build(False)(h2, r2, w2, params)

    # TODO(synk): optional int8 (v5e/v6e) / fp8 (v7x) weight quantization and
    # pl.Buffered(3) on the activation stream are left for trace-guided tuning.
    return out.reshape(B, S, H)


if __name__ == "__main__":
    # Small config that still exercises the >=2-step grid and the masked
    # partial last block: M = 2*100 = 200 rows -> tm = 104, grid = 2.
    B, S = 2, 100
    INTERMEDIATE, HIDDEN = 256, 128
    EPS = 1e-12

    key = jax.random.PRNGKey(0)
    k1, k2, k3, k4 = jax.random.split(key, 4)

    hidden_states = jax.random.normal(k1, (B, S, INTERMEDIATE), dtype=jnp.float32)
    input_tensor = jax.random.normal(k2, (B, S, HIDDEN), dtype=jnp.float32)

    # Deterministic parameter init (nn.Linear-style uniform, LN gamma=1, beta=0)
    bound = 1.0 / (INTERMEDIATE ** 0.5)
    w = jax.random.uniform(k3, (INTERMEDIATE, HIDDEN), jnp.float32, -bound, bound)
    b = jax.random.uniform(k4, (HIDDEN,), jnp.float32, -bound, bound)
    gamma = jnp.ones((HIDDEN,), jnp.float32)
    beta = jnp.zeros((HIDDEN,), jnp.float32)

    out = bert_output(hidden_states, input_tensor, w, b, gamma, beta, eps=EPS)
    jax.block_until_ready(out)

    # Pure-JAX reference (same bf16 matmul / f32 accumulation path as the kernel)
    h2f = hidden_states.reshape(-1, INTERMEDIATE)
    ref = jnp.dot(h2f.astype(jnp.bfloat16), w.astype(jnp.bfloat16),
                  preferred_element_type=jnp.float32) + b
    ref = ref + input_tensor.reshape(-1, HIDDEN)
    mu = ref.mean(-1, keepdims=True)
    var = ((ref - mu) ** 2).mean(-1, keepdims=True)
    ref = (ref - mu) / jnp.sqrt(var + EPS) * gamma + beta
    ref = ref.reshape(B, S, HIDDEN)
    assert out.shape == (B, S, HIDDEN)
    assert jnp.allclose(out, ref, atol=2e-3, rtol=2e-3), "mismatch vs reference"

    print("KERNEL_OK")
</pallas_src>

<mosaic_0001>
module attributes {stable_mosaic.version = 11 : i64} {
  func.func @bert_output_kernel(%arg0: i32, %arg1: memref<104x256xf32, #tpu.memory_space<vmem>>, %arg2: memref<104x128xf32, #tpu.memory_space<vmem>>, %arg3: memref<256x128xbf16, #tpu.memory_space<vmem>>, %arg4: memref<3x128xf32, #tpu.memory_space<vmem>>, %arg5: memref<104x128xf32, #tpu.memory_space<vmem>>) attributes {dimension_semantics = [#tpu.dimension_semantics<parallel>], iteration_bounds = array<i64: 2>, scalar_prefetch = 0 : i64, scratch_operands = 0 : i64, tpu.core_type = #tpu.core_type<tc>, window_params = [{transform_indices = @transform_0, window_bounds = array<i64: 104, 256>}, {transform_indices = @transform_1, window_bounds = array<i64: 104, 128>}, {pipeline_mode = #tpu.pipeline_mode<synchronous>, transform_indices = @transform_2, window_bounds = array<i64: 256, 128>}, {pipeline_mode = #tpu.pipeline_mode<synchronous>, transform_indices = @transform_3, window_bounds = array<i64: 3, 128>}, {transform_indices = @transform_4, window_bounds = array<i64: 104, 128>}]} {
    %c0 = arith.constant 0 : index
    %c0_0 = arith.constant 0 : index
    %0 = vector.load %arg1[%c0, %c0_0] : memref<104x256xf32, #tpu.memory_space<vmem>>, vector<104x256xf32>
    %1 = arith.truncf %0 : vector<104x256xf32> to vector<104x256xbf16>
    %c0_1 = arith.constant 0 : index
    %c0_2 = arith.constant 0 : index
    %2 = vector.load %arg3[%c0_1, %c0_2] : memref<256x128xbf16, #tpu.memory_space<vmem>>, vector<256x128xbf16>
    %cst = arith.constant dense<0.000000e+00> : vector<104x128xf32>
    %3 = tpu.matmul %1, %2, %cst {dimension_numbers = #tpu.dot_dimension_numbers<[1], [0], [0], [1], [0, 0, 1, 1], [], []>} : vector<104x256xbf16>, vector<256x128xbf16>, vector<104x128xf32> -> vector<104x128xf32>
    %c0_3 = arith.constant 0 : index
    %c0_4 = arith.constant 0 : index
    %4 = vector.load %arg4[%c0_3, %c0_4] : memref<3x128xf32, #tpu.memory_space<vmem>>, vector<1x128xf32>
    %5 = vector.broadcast %4 : vector<1x128xf32> to vector<104x128xf32>
    %6 = arith.addf %3, %5 : vector<104x128xf32>
    %c0_5 = arith.constant 0 : index
    %c0_6 = arith.constant 0 : index
    %7 = vector.load %arg2[%c0_5, %c0_6] : memref<104x128xf32, #tpu.memory_space<vmem>>, vector<104x128xf32>
    %8 = arith.addf %6, %7 : vector<104x128xf32>
    %cst_7 = arith.constant dense<0.000000e+00> : vector<104xf32>
    %9 = vector.multi_reduction <add>, %8, %cst_7 [1] : vector<104x128xf32> to vector<104xf32>
    %10 = vector.shape_cast %9 : vector<104xf32> to vector<104x1xf32>
    %cst_8 = arith.constant 1.280000e+02 : f32
    %11 = vector.broadcast %cst_8 : f32 to vector<104x1xf32>
    %12 = arith.divf %10, %11 : vector<104x1xf32>
    %13 = arith.mulf %8, %8 : vector<104x128xf32>
    %cst_9 = arith.constant dense<0.000000e+00> : vector<104xf32>
    %14 = vector.multi_reduction <add>, %13, %cst_9 [1] : vector<104x128xf32> to vector<104xf32>
    %15 = vector.shape_cast %14 : vector<104xf32> to vector<104x1xf32>
    %cst_10 = arith.constant 1.280000e+02 : f32
    %16 = vector.broadcast %cst_10 : f32 to vector<104x1xf32>
    %17 = arith.divf %15, %16 : vector<104x1xf32>
    %18 = arith.mulf %12, %12 : vector<104x1xf32>
    %19 = arith.subf %17, %18 : vector<104x1xf32>
    %cst_11 = arith.constant 0.000000e+00 : f32
    %20 = vector.broadcast %cst_11 : f32 to vector<104x1xf32>
    %21 = arith.maximumf %19, %20 : vector<104x1xf32>
    %22 = vector.broadcast %12 : vector<104x1xf32> to vector<104x128xf32>
    %23 = arith.subf %8, %22 : vector<104x128xf32>
    %cst_12 = arith.constant 9.99999996E-13 : f32
    %24 = vector.broadcast %cst_12 : f32 to vector<104x1xf32>
    %25 = arith.addf %21, %24 : vector<104x1xf32>
    %26 = math.rsqrt %25 : vector<104x1xf32>
    %27 = vector.broadcast %26 : vector<104x1xf32> to vector<104x128xf32>
    %28 = arith.mulf %23, %27 : vector<104x128xf32>
    %c1 = arith.constant 1 : index
    %c0_13 = arith.constant 0 : index
    %29 = vector.load %arg4[%c1, %c0_13] : memref<3x128xf32, #tpu.memory_space<vmem>>, vector<1x128xf32>
    %30 = vector.broadcast %29 : vector<1x128xf32> to vector<104x128xf32>
    %31 = arith.mulf %28, %30 : vector<104x128xf32>
    %c2 = arith.constant 2 : index
    %c0_14 = arith.constant 0 : index
    %32 = vector.load %arg4[%c2, %c0_14] : memref<3x128xf32, #tpu.memory_space<vmem>>, vector<1x128xf32>
    %33 = vector.broadcast %32 : vector<1x128xf32> to vector<104x128xf32>
    %34 = arith.addf %31, %33 : vector<104x128xf32>
    %c0_15 = arith.constant 0 : index
    %c0_16 = arith.constant 0 : index
    %35 = vector.load %arg5[%c0_15, %c0_16] : memref<104x128xf32, #tpu.memory_space<vmem>>, vector<104x128xf32>
    tpu.vector_store %arg5[%c0_15, %c0_16], %34 {strides = array<i32>} : memref<104x128xf32, #tpu.memory_space<vmem>>, vector<104x128xf32>,
    return
  }
  func.func @transform_0(%arg0: i32) -> (i32, i32) {
    %c0_i32 = arith.constant 0 : i32
    %c0_i32_0 = arith.constant 0 : i32
    return %arg0, %c0_i32 : i32, i32
  }
  func.func @transform_1(%arg0: i32) -> (i32, i32) {
    %c0_i32 = arith.constant 0 : i32
    %c0_i32_0 = arith.constant 0 : i32
    return %arg0, %c0_i32 : i32, i32
  }
  func.func @transform_2(%arg0: i32) -> (i32, i32) {
    %c0_i32 = arith.constant 0 : i32
    %c0_i32_0 = arith.constant 0 : i32
    %c0_i32_1 = arith.constant 0 : i32
    return %c0_i32, %c0_i32_0 : i32, i32
  }
  func.func @transform_3(%arg0: i32) -> (i32, i32) {
    %c0_i32 = arith.constant 0 : i32
    %c0_i32_0 = arith.constant 0 : i32
    %c0_i32_1 = arith.constant 0 : i32
    return %c0_i32, %c0_i32_0 : i32, i32
  }
  func.func @transform_4(%arg0: i32) -> (i32, i32) {
    %c0_i32 = arith.constant 0 : i32
    %c0_i32_0 = arith.constant 0 : i32
    return %arg0, %c0_i32 : i32, i32
  }
}

</mosaic_0001>

<llo_original>
// kernel: tpu_custom_call.1
$region0: #{tpu_custom_call.1}
  #allocation0 [shape = 'u32[]', space=smem, size = 0x4, offset = 0x4, fixed_abs, tag = 'smem constant byte address 0x4 - core index']
  #allocation1 [shape = 'u32[144,128]{1,0:T(1,128)}', space=vmem, size = 0x12000, scoped, tag = 'internal scratch']
  %s0 = inlined_call_operand.hbm [shape: f32[200,256], index: 0, kind: input, shape index: {}]
  %s1 = inlined_call_operand.hbm [shape: f32[200,128], index: 1, kind: input, shape index: {}]
  %s2 = inlined_call_operand.hbm [shape: bf16[256,128], index: 2, kind: input, shape index: {}]
  %s3 = inlined_call_operand.vmem [shape: f32[3,128], index: 3, kind: input, shape index: {}]
  %s4 = inlined_call_operand.hbm [shape: f32[200,128], index: 4, kind: output, shape index: {}]
  %s5 = sld [smem:[#allocation0]]
  $region61: #{tpu_custom_call.1} parent=0
    _
  %s7 = ssub.s32 1, %s5
  %s8 = scalar_select 0, %s7, %s5
  $region1: #{tpu_custom_call.1} parent=0
    #allocation2 [shape = 'u8[212992]{0}', space=vmem, size = 0x34000, scoped, tag = 'input window, operand 0']
    #allocation3 [shape = 's32[2]{0}', space=sflag, size = 0x8, scoped, tag = 'scoped memory for tpu_custom_call.1']
    #allocation4 [shape = 's32[2]{0}', space=sflag, size = 0x8, scoped, tag = 'scoped memory for tpu_custom_call.1']
    #allocation5 [shape = 'u8[106496]{0}', space=vmem, size = 0x1a000, scoped, tag = 'input window, operand 1']
    #allocation6 [shape = 's32[2]{0}', space=sflag, size = 0x8, scoped, tag = 'scoped memory for tpu_custom_call.1']
    #allocation7 [shape = 'u8[65536]{0}', space=vmem, size = 0x10000, scoped, tag = 'input window, operand 2, single buffered']
    #allocation8 [shape = 'u8[106496]{0}', space=vmem, size = 0x1a000, scoped, tag = 'output window, operand 0']
    %9 = vsyncpa [#allocation3], 0
    %s10 = scalar_lea.sflag [#allocation3], 1
    %11 = vsyncpa %s10, 0
    %12 = vsyncpa [#allocation6], 0
    %s13 = scalar_lea.sflag [#allocation6], 1
    %14 = vsyncpa %s13, 0
    %15 = vsyncpa [#allocation4], 0
    %s16 = scalar_lea.sflag [#allocation4], 1
    %17 = vsyncpa %s16, 0
    loop: start=0, step=1, limit=4
    $region2: #{tpu_custom_call.1} parent=1 // loop_pre_header
      _
    $region3: #{tpu_custom_call.1} parent=1 // loop_header
      %s19 = sphi 0, %s23
      %p20 = scmp.ge.s32.totalorder %s19, 4
      %s29 = sphi 0, %s31
      %s32 = sphi 0, %s29
      %s33 = sphi 0, %s32
      %s49 = sphi 0, %s33
      %s55 = sphi 0, %s57
      %s58 = sphi 0, %s55
      %s59 = sphi 0, %s58
      %s75 = sphi 0, %s59
      %s79 = sphi 0, %s79
      %s81 = sphi 0, %s79
      %s82 = sphi 0, %s81
      %s96 = sphi 0, %s82
      %s100 = sphi 0, %s100
      %s102 = sphi 0, %s100
      %s103 = sphi 0, %s102
      %s117 = sphi 0, %s103
      %s123 = sphi 0, %s125
      %s126 = sphi 0, %s123
      %s127 = sphi 0, %s126
      %s143 = sphi 0, %s127
    $region4: #{tpu_custom_call.1} parent=1 // loop_header_branch
      %22 = sbr.rel (%p20) target = $region8
    $region5: #{tpu_custom_call.1} parent=1 // loop_body
      %s24 = ssub.s32 %s19, 1
      %s25 = ssub.s32 %s19, 2
      %s26 = sadd.s32 %s19, 1
      %s27 = ssub.s32 %s19, %s26
      %p28 = scmp.eq.s32.totalorder %s27, 0
      %s30 = sadd.s32 %s29, 1
      %s31 = scalar_select %p28, %s29, %s30
      %p34 = pneg %p28
      %p35 = scmp.eq.s32.totalorder %s19, 1
      %p36 = por %p34, %p35
      %p37 = scmp.ne.s32.totalorder %s29, %s32
      %p38 = scmp.eq.s32.totalorder %s19, 0
      %p39 = por %p37, %p38
      %p40 = scmp.ne.s32.totalorder %s29, %s32
      %p41 = scmp.eq.s32.totalorder %s24, 1
      %p42 = por %p40, %p41
      %p43 = scmp.ne.s32.totalorder %s32, %s33
      %p44 = scmp.eq.s32.totalorder %s24, 0
      %p45 = por %p43, %p44
      %p46 = scmp.ne.s32.totalorder %s32, %s33
      %p47 = scmp.eq.s32.totalorder %s25, 1
      %p48 = por %p46, %p47
      %p50 = scmp.ne.s32.totalorder %s33, %s49
      %p51 = scmp.eq.s32.totalorder %s25, 0
      %p52 = por %p50, %p51
      %s53 = ssub.s32 %s19, %s26
      %p54 = scmp.eq.s32.totalorder %s53, 0
      %s56 = sadd.s32 %s55, 1
      %s57 = scalar_select %p54, %s55, %s56
      %p60 = pneg %p54
      %p61 = scmp.eq.s32.totalorder %s19, 1
      %p62 = por %p60, %p61
      %p63 = scmp.ne.s32.totalorder %s55, %s58
      %p64 = scmp.eq.s32.totalorder %s19, 0
      %p65 = por %p63, %p64
      %p66 = scmp.ne.s32.totalorder %s55, %s58
      %p67 = scmp.eq.s32.totalorder %s24, 1
      %p68 = por %p66, %p67
      %p69 = scmp.ne.s32.totalorder %s58, %s59
      %p70 = scmp.eq.s32.totalorder %s24, 0
      %p71 = por %p69, %p70
      %p72 = scmp.ne.s32.totalorder %s58, %s59
      %p73 = scmp.eq.s32.totalorder %s25, 1
      %p74 = por %p72, %p73
      %p76 = scmp.ne.s32.totalorder %s59, %s75
      %p77 = scmp.eq.s32.totalorder %s25, 0
      %p78 = por %p76, %p77
      %s80 = sadd.s32 %s79, 1
      %p83 = scmp.eq.s32.totalorder %s19, 1
      %p84 = scmp.ne.s32.totalorder %s79, %s81
      %p85 = scmp.eq.s32.totalorder %s19, 0
      %p86 = por %p84, %p85
      %p87 = scmp.ne.s32.totalorder %s79, %s81
      %p88 = scmp.eq.s32.totalorder %s24, 1
      %p89 = por %p87, %p88
      %p90 = scmp.ne.s32.totalorder %s81, %s82
      %p91 = scmp.eq.s32.totalorder %s24, 0
      %p92 = por %p90, %p91
      %p93 = scmp.ne.s32.totalorder %s81, %s82
      %p94 = scmp.eq.s32.totalorder %s25, 1
      %p95 = por %p93, %p94
      %p97 = scmp.ne.s32.totalorder %s82, %s96
      %p98 = scmp.eq.s32.totalorder %s25, 0
      %p99 = por %p97, %p98
      %s101 = sadd.s32 %s100, 1
      %p104 = scmp.eq.s32.totalorder %s19, 1
      %p105 = scmp.ne.s32.totalorder %s100, %s102
      %p106 = scmp.eq.s32.totalorder %s19, 0
      %p107 = por %p105, %p106
      %p108 = scmp.ne.s32.totalorder %s100, %s102
      %p109 = scmp.eq.s32.totalorder %s24, 1
      %p110 = por %p108, %p109
      %p111 = scmp.ne.s32.totalorder %s102, %s103
      %p112 = scmp.eq.s32.totalorder %s24, 0
      %p113 = por %p111, %p112
      %p114 = scmp.ne.s32.totalorder %s102, %s103
      %p115 = scmp.eq.s32.totalorder %s25, 1
      %p116 = por %p114, %p115
      %p118 = scmp.ne.s32.totalorder %s103, %s117
      %p119 = scmp.eq.s32.totalorder %s25, 0
      %p120 = por %p118, %p119
      %s121 = ssub.s32 %s19, %s26
      %p122 = scmp.eq.s32.totalorder %s121, 0
      %s124 = sadd.s32 %s123, 1
      %s125 = scalar_select %p122, %s123, %s124
      %p128 = pneg %p122
      %p129 = scmp.eq.s32.totalorder %s19, 1
      %p130 = por %p128, %p129
      %p131 = scmp.ne.s32.totalorder %s123, %s126
      %p132 = scmp.eq.s32.totalorder %s19, 0
      %p133 = por %p131, %p132
      %p134 = scmp.ne.s32.totalorder %s123, %s126
      %p135 = scmp.eq.s32.totalorder %s24, 1
      %p136 = por %p134, %p135
      %p137 = scmp.ne.s32.totalorder %s126, %s127
      %p138 = scmp.eq.s32.totalorder %s24, 0
      %p139 = por %p137, %p138
      %p140 = scmp.ne.s32.totalorder %s126, %s127
      %p141 = scmp.eq.s32.totalorder %s25, 1
      %p142 = por %p140, %p141
      %p144 = scmp.ne.s32.totalorder %s127, %s143
      %p145 = scmp.eq.s32.totalorder %s25, 0
      %p146 = por %p144, %p145
      %p147 = scmp.le.s32.totalorder 1, %s19
      %p148 = scmp.lt.s32.totalorder %s19, 3
      %p149 = pnand %p147, %p148
      %p150 = pneg %p149
      // Predicated region
      $region9: #{tpu_custom_call.1} parent=5 // pred_check
        _
      $region10: #{tpu_custom_call.1} parent=5 // pred_check_branch
        %152 = sbr.rel (%p149) target = $region12
      $region11: #{tpu_custom_call.1} parent=5 // pred_region
        %s153 = ssub.s32 %s19, 1
        // Predicated region
        $region13: #{tpu_custom_call.1} parent=11 // pred_check
          %p154 = pneg %p92
        $region14: #{tpu_custom_call.1} parent=11 // pred_check_branch
          %156 = sbr.rel (%p154) target = $region16
        $region15: #{tpu_custom_call.1} parent=11 // pred_region
          %s158 = ssub.s32 2048, 2048
          %159 = vsyncadd [#allocation6], %s158
          %s160 = sshll.u32 [#allocation7], 4
          %s161 = int_to_ptr.vmem [resolvable:$true] %s160
          %166 = dma.hbm_to_vmem [thread:$0]  %s2, 2048, %s161, [#allocation6], 64, 64, 4
        $region16: #{tpu_custom_call.1} parent=11 // pred_fallthru
          _
        // Predicated region
        $region17: #{tpu_custom_call.1} parent=11 // pred_check
          %p167 = pneg %p113
        $region18: #{tpu_custom_call.1} parent=11 // pred_check_branch
          %169 = sbr.rel (%p167) target = $region20
        $region19: #{tpu_custom_call.1} parent=11 // pred_region
          _
        $region20: #{tpu_custom_call.1} parent=11 // pred_fallthru
          _
      $region12: #{tpu_custom_call.1} parent=5 // pred_fallthru
        _
      %p170 = scmp.lt.s32.totalorder %s19, 2
      // Predicated region
      $region21: #{tpu_custom_call.1} parent=5 // pred_check
        %p171 = pneg %p170
      $region22: #{tpu_custom_call.1} parent=5 // pred_check_branch
        %173 = sbr.rel (%p171) target = $region24
      $region23: #{tpu_custom_call.1} parent=5 // pred_region
        // Predicated region
        $region25: #{tpu_custom_call.1} parent=23 // pred_check
          %p174 = pneg %p39
        $region26: #{tpu_custom_call.1} parent=23 // pred_check_branch
          %176 = sbr.rel (%p174) target = $region28
        $region27: #{tpu_custom_call.1} parent=23 // pred_region
          %s177 = sand.u32 %s29, 1
          %s178 = scalar_lea.sflag [#allocation3], %s177
          %s179 = sand.u32 %s29, 1
          %s180 = smul.addr %s179, 208
          %s181 = scalar_lea.vmem [#allocation2], %s180
          %s182 = smul.u32 13, %s19
          %s183 = ssub.s32 25, %s182
          %p184 = scmp.lt.s32.totalorder %s183, 13
          %s185 = scalar_select %p184, %s183, 13
          %s186 = smul.u32 128, %s185
          %s187 = smul.u32 %s186, 2
          %s189 = ssub.s32 3328, %s187
          %190 = vsyncadd %s178, %s189
          %p191 = scmp.ne.s32.totalorder 0, %s187
          %s192 = smul.addr %s182, 2
          %s193 = smul.addr %s192, 128
          %s194 = scalar_lea.hbm %s0, %s193
          %s195 = smul.u32 16, %s185
          %s196 = sshll.u32 %s181, 4
          %s197 = int_to_ptr.vmem [resolvable:$true] %s196
          %s198 = sshll.u32 %s195, 4
          %202 = dma.hbm_to_vmem [thread:$0]  (%p191), %s194, %s198, %s197, %s178, 256, 256, 16
        $region28: #{tpu_custom_call.1} parent=23 // pred_fallthru
          _
        // Predicated region
        $region29: #{tpu_custom_call.1} parent=23 // pred_check
          %p203 = pneg %p65
        $region30: #{tpu_custom_call.1} parent=23 // pred_check_branch
          %205 = sbr.rel (%p203) target = $region32
        $region31: #{tpu_custom_call.1} parent=23 // pred_region
          %s206 = sand.u32 %s19, 1
          %s207 = scalar_lea.sflag [#allocation6], %s206
          %s208 = sand.u32 %s55, 1
          %s209 = smul.addr %s208, 104
          %s210 = scalar_lea.vmem [#allocation5], %s209
          %s211 = smul.u32 13, %s19
          %s212 = ssub.s32 25, %s211
          %p213 = scmp.lt.s32.totalorder %s212, 13
          %s214 = scalar_select %p213, %s212, 13
          %s215 = smul.u32 128, %s214
          %s217 = ssub.s32 1664, %s215
          %218 = vsyncadd %s207, %s217
          %p219 = scmp.ne.s32.totalorder 0, %s215
          %s220 = smul.addr %s211, 128
          %s221 = scalar_lea.hbm %s1, %s220
          %s222 = smul.u32 8, %s214
          %s223 = sshll.u32 %s210, 4
          %s224 = int_to_ptr.vmem [resolvable:$true] %s223
          %s225 = sshll.u32 %s222, 4
          %229 = dma.hbm_to_vmem [thread:$0]  (%p219), %s221, %s225, %s224, %s207, 128, 128, 8
        $region32: #{tpu_custom_call.1} parent=23 // pred_fallthru
          _
      $region24: #{tpu_custom_call.1} parent=5 // pred_fallthru
        _
      %p230 = scmp.le.s32.totalorder 1, %s19
      %p231 = scmp.lt.s32.totalorder %s19, 3
      %p232 = pnand %p230, %p231
      %p233 = pneg %p232
      // Predicated region
      $region33: #{tpu_custom_call.1} parent=5 // pred_check
        _
      $region34: #{tpu_custom_call.1} parent=5 // pred_check_branch
        %235 = sbr.rel (%p232) target = $region36
      $region35: #{tpu_custom_call.1} parent=5 // pred_region
        %s236 = ssub.s32 %s19, 1
        %s237 = sand.u32 %s32, 1
        %s238 = scalar_lea.sflag [#allocation3], %s237
        %s239 = sand.u32 %s32, 1
        %s240 = smul.addr %s239, 208
        %s241 = scalar_lea.vmem [#allocation2], %s240
        // Predicated region
        $region37: #{tpu_custom_call.1} parent=35 // pred_check
          %p242 = pneg %p45
        $region38: #{tpu_custom_call.1} parent=35 // pred_check_branch
          %244 = sbr.rel (%p242) target = $region40
        $region39: #{tpu_custom_call.1} parent=35 // pred_region
          %245 = dma.done %s238, 3328
        $region40: #{tpu_custom_call.1} parent=35 // pred_fallthru
          _
        %s246 = sand.u32 %s24, 1
        %s247 = scalar_lea.sflag [#allocation6], %s246
        %s248 = sand.u32 %s58, 1
        %s249 = smul.addr %s248, 104
        %s250 = scalar_lea.vmem [#allocation5], %s249
        // Predicated region
        $region41: #{tpu_custom_call.1} parent=35 // pred_check
          %p251 = pneg %p71
        $region42: #{tpu_custom_call.1} parent=35 // pred_check_branch
          %253 = sbr.rel (%p251) target = $region44
        $region43: #{tpu_custom_call.1} parent=35 // pred_region
          %254 = dma.done %s247, 1664
        $region44: #{tpu_custom_call.1} parent=35 // pred_fallthru
          _
        // Predicated region
        $region45: #{tpu_custom_call.1} parent=35 // pred_check
          %p255 = pneg %p92
        $region46: #{tpu_custom_call.1} parent=35 // pred_check_branch
          %257 = sbr.rel (%p255) target = $region48
        $region47: #{tpu_custom_call.1} parent=35 // pred_region
          %258 = dma.done [#allocation6], 2048
        $region48: #{tpu_custom_call.1} parent=35 // pred_fallthru
          _
        %s259 = sand.u32 %s32, 1
        %s260 = scalar_lea.sflag [#allocation3], %s259
        %s261 = sand.u32 %s32, 1
        %s262 = smul.addr %s261, 208
        %s263 = scalar_lea.vmem [#allocation2], %s262
        %p264 = pneg %p45
        %p265 = pneg %p42
        %s266 = sand.u32 %s24, 1
        %s267 = scalar_lea.sflag [#allocation6], %s266
        %s268 = sand.u32 %s58, 1
        %s269 = smul.addr %s268, 104
        %s270 = scalar_lea.vmem [#allocation5], %s269
        %p271 = pneg %p71
        %p272 = pneg %p68
        %p273 = pneg %p92
        %p274 = pneg %p89
        %p275 = pneg %p113
        %p276 = pneg %p110
        %p277 = pneg %p139
        %p278 = pneg %p136
        %s279 = sand.u32 %s126, 1
        %s280 = scalar_lea.sflag [#allocation4], %s279
        %s281 = sand.u32 %s126, 1
        %s282 = smul.addr %s281, 104
        %s283 = scalar_lea.vmem [#allocation8], %s282
        %s284 = smul.u32 13, %s24
        %s285 = ssub.s32 25, %s284
        %p286 = scmp.lt.s32.totalorder %s285, 13
        %s287 = scalar_select %p286, %s285, 13
        %s288 = smul.u32 128, %s287
        %s289 = smul.u32 %s288, 2
        %s290 = smul.u32 13, %s24
        %s291 = ssub.s32 25, %s290
        %p292 = scmp.lt.s32.totalorder %s291, 13
        %s293 = scalar_select %p292, %s291, 13
        %s294 = smul.u32 128, %s293
        %s295 = smul.u32 13, %s24
        %s296 = ssub.s32 25, %s295
        %p297 = scmp.lt.s32.totalorder %s296, 13
        %s298 = scalar_select %p297, %s296, 13
        %s299 = smul.u32 128, %s298
        %v301 = vld [vmem:[%s241] sm:$0xff]
        %v302 = vld [vmem:[%s241 + $0x8] sm:$0xff]
        %v303 = vld [vmem:[%s241 + $0x10] sm:$0xff]
        %v304 = vld [vmem:[%s241 + $0x18] sm:$0xff]
        %v305 = vld [vmem:[%s241 + $0x20] sm:$0xff]
        %v306 = vld [vmem:[%s241 + $0x28] sm:$0xff]
        %v307 = vld [vmem:[%s241 + $0x30] sm:$0xff]
        %v308 = vld [vmem:[%s241 + $0x38] sm:$0xff]
        %v309 = vld [vmem:[%s241 + $0x40] sm:$0xff]
        %v310 = vld [vmem:[%s241 + $0x48] sm:$0xff]
        %v311 = vld [vmem:[%s241 + $0x50] sm:$0xff]
        %v312 = vld [vmem:[%s241 + $0x58] sm:$0xff]
        %v313 = vld [vmem:[%s241 + $0x60] sm:$0xff]
        %v314 = vld [vmem:[%s241 + $0x68] sm:$0xff]
        %v315 = vld [vmem:[%s241 + $0x70] sm:$0xff]
        %v316 = vld [vmem:[%s241 + $0x78] sm:$0xff]
        %v317 = vld [vmem:[%s241 + $0x80] sm:$0xff]
        %v318 = vld [vmem:[%s241 + $0x88] sm:$0xff]
        %v319 = vld [vmem:[%s241 + $0x90] sm:$0xff]
        %v320 = vld [vmem:[%s241 + $0x98] sm:$0xff]
        %v321 = vld [vmem:[%s241 + $0xa0] sm:$0xff]
        %v322 = vld [vmem:[%s241 + $0xa8] sm:$0xff]
        %v323 = vld [vmem:[%s241 + $0xb0] sm:$0xff]
        %v324 = vld [vmem:[%s241 + $0xb8] sm:$0xff]
        %v325 = vld [vmem:[%s241 + $0xc0] sm:$0xff]
        %v326 = vld [vmem:[%s241 + $0xc8] sm:$0xff]
        %v327 = vpack.c.bf16 %v303, %v301
        %v328 = vpack.c.bf16 %v304, %v302
        %v329 = vpack.c.bf16 %v307, %v305
        %v330 = vpack.c.bf16 %v308, %v306
        %v331 = vpack.c.bf16 %v311, %v309
        %v332 = vpack.c.bf16 %v312, %v310
        %v333 = vpack.c.bf16 %v315, %v313
        %v334 = vpack.c.bf16 %v316, %v314
        %v335 = vpack.c.bf16 %v319, %v317
        %v336 = vpack.c.bf16 %v320, %v318
        %v337 = vpack.c.bf16 %v323, %v321
        %v338 = vpack.c.bf16 %v324, %v322
        %v339 = vpack.c.bf16 %v325, %v325
        %v340 = vpack.c.bf16 %v326, %v326
        %v341 = vld [vmem:[#allocation7] sm:$0xf]
        %v342 = vld [vmem:[#allocation7 + $0x4] sm:$0xf]
        %v343 = vld [vmem:[#allocation7 + $0x8] sm:$0xf]
        %v344 = vld [vmem:[#allocation7 + $0xc] sm:$0xf]
        %v345 = vld [vmem:[#allocation7 + $0x10] sm:$0xf]
        %v346 = vld [vmem:[#allocation7 + $0x14] sm:$0xf]
        %v347 = vld [vmem:[#allocation7 + $0x18] sm:$0xf]
        %v348 = vld [vmem:[#allocation7 + $0x1c] sm:$0xf]
        %v349 = vld [vmem:[#allocation7 + $0x20] sm:$0xf]
        %v350 = vld [vmem:[#allocation7 + $0x24] sm:$0xf]
        %v351 = vld [vmem:[#allocation7 + $0x28] sm:$0xf]
        %v352 = vld [vmem:[#allocation7 + $0x2c] sm:$0xf]
        %v353 = vld [vmem:[#allocation7 + $0x30] sm:$0xf]
        %v354 = vld [vmem:[#allocation7 + $0x34] sm:$0xf]
        %v355 = vld [vmem:[#allocation7 + $0x38] sm:$0xf]
        %v356 = vld [vmem:[#allocation7 + $0x3c] sm:$0xf]
        %v357 = vld [vmem:[#allocation7 + $0x40] sm:$0xf]
        %v358 = vld [vmem:[#allocation7 + $0x44] sm:$0xf]
        %v359 = vld [vmem:[#allocation7 + $0x48] sm:$0xf]
        %v360 = vld [vmem:[#allocation7 + $0x4c] sm:$0xf]
        %v361 = vld [vmem:[#allocation7 + $0x50] sm:$0xf]
        %v362 = vld [vmem:[#allocation7 + $0x54] sm:$0xf]
        %v363 = vld [vmem:[#allocation7 + $0x58] sm:$0xf]
        %v364 = vld [vmem:[#allocation7 + $0x5c] sm:$0xf]
        %v365 = vld [vmem:[#allocation7 + $0x60] sm:$0xf]
        %v366 = vld [vmem:[#allocation7 + $0x64] sm:$0xf]
        %v367 = vld [vmem:[#allocation7 + $0x68] sm:$0xf]
        %v368 = vld [vmem:[#allocation7 + $0x6c] sm:$0xf]
        %v369 = vld [vmem:[#allocation7 + $0x70] sm:$0xf]
        %v370 = vld [vmem:[#allocation7 + $0x74] sm:$0xf]
        %v371 = vld [vmem:[#allocation7 + $0x78] sm:$0xf]
        %v372 = vld [vmem:[#allocation7 + $0x7c] sm:$0xf]
        %v373 = vld [vmem:[%s3] sm:$0x1]
        %v374 = vlaneseq
        %v375 = vshrl.u32 %v374, 7
        %v376 = vsub.s32 0, %v375
        %v377 = vrot.slane %v373, %v376
        %v410 = vunpack.c.l.b16 %v341
        %v411 = vunpack.c.l.b16 %v342
        %v412 = vunpack.c.l.b16 %v343
        %v413 = vunpack.c.l.b16 %v344
        %v414 = vunpack.c.l.b16 %v345
        %v415 = vunpack.c.l.b16 %v346
        %v416 = vunpack.c.l.b16 %v347
        %v417 = vunpack.c.l.b16 %v348
        %v418 = vunpack.c.l.b16 %v349
        %v419 = vunpack.c.l.b16 %v350
        %v420 = vunpack.c.l.b16 %v351
        %v421 = vunpack.c.l.b16 %v352
        %v422 = vunpack.c.l.b16 %v353
        %v423 = vunpack.c.l.b16 %v354
        %v424 = vunpack.c.l.b16 %v355
        %v425 = vunpack.c.l.b16 %v356
        %v426 = vunpack.c.l.b16 %v357
        %v427 = vunpack.c.l.b16 %v358
        %v428 = vunpack.c.l.b16 %v359
        %v429 = vunpack.c.l.b16 %v360
        %v430 = vunpack.c.l.b16 %v361
        %v431 = vunpack.c.l.b16 %v362
        %v432 = vunpack.c.l.b16 %v363
        %v433 = vunpack.c.l.b16 %v364
        %v434 = vunpack.c.l.b16 %v365
        %v435 = vunpack.c.l.b16 %v366
        %v436 = vunpack.c.l.b16 %v367
        %v437 = vunpack.c.l.b16 %v368
        %v438 = vunpack.c.l.b16 %v369
        %v439 = vunpack.c.l.b16 %v370
        %v440 = vunpack.c.l.b16 %v371
        %v441 = vunpack.c.l.b16 %v372
        %v442 = vpack.c.b16 %v411, %v410
        %v443 = vpack.c.b16 %v413, %v412
        %v444 = vpack.c.b16 %v415, %v414
        %v445 = vpack.c.b16 %v417, %v416
        %v446 = vpack.c.b16 %v419, %v418
        %v447 = vpack.c.b16 %v421, %v420
        %v448 = vpack.c.b16 %v423, %v422
        %v449 = vpack.c.b16 %v425, %v424
        %v450 = vpack.c.b16 %v427, %v426
        %v451 = vpack.c.b16 %v429, %v428
        %v452 = vpack.c.b16 %v431, %v430
        %v453 = vpack.c.b16 %v433, %v432
        %v454 = vpack.c.b16 %v435, %v434
        %v455 = vpack.c.b16 %v437, %v436
        %v456 = vpack.c.b16 %v439, %v438
        %v457 = vpack.c.b16 %v441, %v440
        %474 = vmatprep.subr.bf16.mxu0 0
        %475 = vmatpush1.bf16.msra.mxu0 %v442
        %476 = vmatprep.subr.bf16.mxu0 0
        %477 = vmatpush1.bf16.msra.mxu0 %v443
        %478 = vmatprep.subr.bf16.mxu0 0
        %479 = vmatpush1.bf16.msra.mxu0 %v444
        %480 = vmatprep.subr.bf16.mxu0 0
        %481 = vmatpush1.bf16.msra.mxu0 %v445
        %482 = vmatprep.subr.bf16.mxu0 0
        %483 = vmatpush1.bf16.msra.mxu0 %v446
        %484 = vmatprep.subr.bf16.mxu0 0
        %485 = vmatpush1.bf16.msra.mxu0 %v447
        %486 = vmatprep.subr.bf16.mxu0 0
        %487 = vmatpush1.bf16.msra.mxu0 %v448
        %488 = vmatprep.subr.bf16.mxu0 0
        %489 = vmatpush1.bf16.msra.mxu0 %v449
        %490 = vmatprep.subr.bf16.mxu0 0
        %491 = vmatpush1.bf16.msra.mxu0 %v450
        %492 = vmatprep.subr.bf16.mxu0 0
        %493 = vmatpush1.bf16.msra.mxu0 %v451
        %494 = vmatprep.subr.bf16.mxu0 0
        %495 = vmatpush1.bf16.msra.mxu0 %v452
        %496 = vmatprep.subr.bf16.mxu0 0
        %497 = vmatpush1.bf16.msra.mxu0 %v453
        %498 = vmatprep.subr.bf16.mxu0 0
        %499 = vmatpush1.bf16.msra.mxu0 %v454
        %500 = vmatprep.subr.bf16.mxu0 0
        %501 = vmatpush1.bf16.msra.mxu0 %v455
        %502 = vmatprep.subr.bf16.mxu0 0
        %503 = vmatpush1.bf16.msra.mxu0 %v456
        %504 = vmatprep.subr.bf16.mxu0 0
        %505 = vmatpush1.bf16.msra.mxu0 %v457
        %506 = vmatprep.mubr.bf16.mxu0 %v328
        %507 = vmatmul.mubr.bf16.gmra.mrb[0].mxu0 %v327
        %v508 = vpop.f32.mrb[0].mxu0
        %v509 = vadd.f32 %v377, %v508
        %v510 = vpop.f32.mrb[0].mxu0
        %v511 = vpop.f32.mrb[0].mxu0
        %v512 = vadd.f32 %v377, %v511
        %v513 = vpop.f32.mrb[0].mxu0
        %514 = vmatprep.mubr.bf16.mxu0 %v330
        %515 = vmatmul.mubr.bf16.gmra.mrb[0].mxu0 %v329
        %v516 = vpop.f32.mrb[0].mxu0
        %v517 = vadd.f32 %v377, %v516
        %v518 = vpop.f32.mrb[0].mxu0
        %v519 = vpop.f32.mrb[0].mxu0
        %v520 = vadd.f32 %v377, %v519
        %v521 = vpop.f32.mrb[0].mxu0
        %522 = vmatprep.mubr.bf16.mxu0 %v332
        %523 = vmatmul.mubr.bf16.gmra.mrb[0].mxu0 %v331
        %v524 = vpop.f32.mrb[0].mxu0
        %v525 = vadd.f32 %v377, %v524
        %v526 = vpop.f32.mrb[0].mxu0
        %v527 = vpop.f32.mrb[0].mxu0
        %v528 = vadd.f32 %v377, %v527
        %v529 = vpop.f32.mrb[0].mxu0
        %530 = vmatprep.mubr.bf16.mxu0 %v334
        %531 = vmatmul.mubr.bf16.gmra.mrb[0].mxu0 %v333
        %v532 = vpop.f32.mrb[0].mxu0
        %v533 = vadd.f32 %v377, %v532
        %v534 = vpop.f32.mrb[0].mxu0
        %v535 = vpop.f32.mrb[0].mxu0
        %v536 = vadd.f32 %v377, %v535
        %v537 = vpop.f32.mrb[0].mxu0
        %538 = vmatprep.mubr.bf16.mxu0 %v336
        %539 = vmatmul.mubr.bf16.gmra.mrb[0].mxu0 %v335
        %v540 = vpop.f32.mrb[0].mxu0
        %v541 = vadd.f32 %v377, %v540
        %v542 = vpop.f32.mrb[0].mxu0
        %v543 = vpop.f32.mrb[0].mxu0
        %v544 = vadd.f32 %v377, %v543
        %v545 = vpop.f32.mrb[0].mxu0
        %546 = vmatprep.mubr.bf16.mxu0 %v338
        %547 = vmatmul.mubr.bf16.gmra.mrb[0].mxu0 %v337
        %v548 = vpop.f32.mrb[0].mxu0
        %v549 = vadd.f32 %v377, %v548
        %v550 = vpop.f32.mrb[0].mxu0
        %v551 = vpop.f32.mrb[0].mxu0
        %v552 = vadd.f32 %v377, %v551
        %v553 = vpop.f32.mrb[0].mxu0
        %554 = vmatprep.mubr.bf16.mxu0 %v340
        %555 = vmatmul.mubr.bf16.gmra.mrb[0].mxu0 %v339
        %v556 = vpop.f32.mrb[0].mxu0
        %v557 = vadd.f32 %v377, %v556
        %v558 = vpop.f32.mrb[0].mxu0
        %v559 = vpop.f32.mrb[0].mxu0
        %v560 = vpop.f32.mrb[0].mxu0
        %561 = vdwg.mxu0
        %v562 = vld [vmem:[%s250] sm:$0xff]
        %v563 = vld [vmem:[%s250 + $0x8] sm:$0xff]
        %v564 = vld [vmem:[%s250 + $0x10] sm:$0xff]
        %v565 = vld [vmem:[%s250 + $0x18] sm:$0xff]
        %v566 = vld [vmem:[%s250 + $0x20] sm:$0xff]
        %v567 = vld [vmem:[%s250 + $0x28] sm:$0xff]
        %v568 = vld [vmem:[%s250 + $0x30] sm:$0xff]
        %v569 = vld [vmem:[%s250 + $0x38] sm:$0xff]
        %v570 = vld [vmem:[%s250 + $0x40] sm:$0xff]
        %v571 = vld [vmem:[%s250 + $0x48] sm:$0xff]
        %v572 = vld [vmem:[%s250 + $0x50] sm:$0xff]
        %v573 = vld [vmem:[%s250 + $0x58] sm:$0xff]
        %v574 = vld [vmem:[%s250 + $0x60] sm:$0xff]
        %v575 = vadd.f32 %v509, %v562
        %v576 = vadd.f32 %v512, %v563
        %v577 = vadd.f32 %v517, %v564
        %v578 = vadd.f32 %v520, %v565
        %v579 = vadd.f32 %v525, %v566
        %v580 = vadd.f32 %v528, %v567
        %v581 = vadd.f32 %v533, %v568
        %v582 = vadd.f32 %v536, %v569
        %v583 = vadd.f32 %v541, %v570
        %v584 = vadd.f32 %v544, %v571
        %v585 = vadd.f32 %v549, %v572
        %v586 = vadd.f32 %v552, %v573
        %v587 = vadd.f32 %v557, %v574
        %588 = vadd.xlane.f32.xlu0 %v575
        %v589 = vpop.xlane.xlu0 %588
        %590 = vadd.xlane.f32.xlu0 %v576
        %v591 = vpop.xlane.xlu0 %590
        %592 = vadd.xlane.f32.xlu0 %v577
        %v593 = vpop.xlane.xlu0 %592
        %594 = vadd.xlane.f32.xlu0 %v578
        %v595 = vpop.xlane.xlu0 %594
        %596 = vadd.xlane.f32.xlu0 %v579
        %v597 = vpop.xlane.xlu0 %596
        %598 = vadd.xlane.f32.xlu0 %v580
        %v599 = vpop.xlane.xlu0 %598
        %600 = vadd.xlane.f32.xlu0 %v581
        %v601 = vpop.xlane.xlu0 %600
        %602 = vadd.xlane.f32.xlu0 %v582
        %v603 = vpop.xlane.xlu0 %602
        %604 = vadd.xlane.f32.xlu0 %v583
        %v605 = vpop.xlane.xlu0 %604
        %606 = vadd.xlane.f32.xlu0 %v584
        %v607 = vpop.xlane.xlu0 %606
        %608 = vadd.xlane.f32.xlu0 %v585
        %v609 = vpop.xlane.xlu0 %608
        %610 = vadd.xlane.f32.xlu0 %v586
        %v611 = vpop.xlane.xlu0 %610
        %612 = vadd.xlane.f32.xlu0 %v587
        %v613 = vpop.xlane.xlu0 %612
        %v614 = vrcp.pop 128.0
        %v615 = vmul.f32 %v589, %v614
        %v616 = vmul.f32 %v591, %v614
        %v617 = vmul.f32 %v593, %v614
        %v618 = vmul.f32 %v595, %v614
        %v619 = vmul.f32 %v597, %v614
        %v620 = vmul.f32 %v599, %v614
        %v621 = vmul.f32 %v601, %v614
        %v622 = vmul.f32 %v603, %v614
        %v623 = vmul.f32 %v605, %v614
        %v624 = vmul.f32 %v607, %v614
        %v625 = vmul.f32 %v609, %v614
        %v626 = vmul.f32 %v611, %v614
        %v627 = vmul.f32 %v613, %v614
        %v628 = vmul.f32 %v575, %v575
        %v629 = vmul.f32 %v576, %v576
        %v630 = vmul.f32 %v577, %v577
        %v631 = vmul.f32 %v578, %v578
        %v632 = vmul.f32 %v579, %v579
        %v633 = vmul.f32 %v580, %v580
        %v634 = vmul.f32 %v581, %v581
        %v635 = vmul.f32 %v582, %v582
        %v636 = vmul.f32 %v583, %v583
        %v637 = vmul.f32 %v584, %v584
        %v638 = vmul.f32 %v585, %v585
        %v639 = vmul.f32 %v586, %v586
        %v640 = vmul.f32 %v587, %v587
        %641 = vadd.xlane.f32.xlu0 %v628
        %v642 = vpop.xlane.xlu0 %641
        %643 = vadd.xlane.f32.xlu0 %v629
        %v644 = vpop.xlane.xlu0 %643
        %645 = vadd.xlane.f32.xlu0 %v630
        %v646 = vpop.xlane.xlu0 %645
        %647 = vadd.xlane.f32.xlu0 %v631
        %v648 = vpop.xlane.xlu0 %647
        %649 = vadd.xlane.f32.xlu0 %v632
        %v650 = vpop.xlane.xlu0 %649
        %651 = vadd.xlane.f32.xlu0 %v633
        %v652 = vpop.xlane.xlu0 %651
        %653 = vadd.xlane.f32.xlu0 %v634
        %v654 = vpop.xlane.xlu0 %653
        %655 = vadd.xlane.f32.xlu0 %v635
        %v656 = vpop.xlane.xlu0 %655
        %657 = vadd.xlane.f32.xlu0 %v636
        %v658 = vpop.xlane.xlu0 %657
        %659 = vadd.xlane.f32.xlu0 %v637
        %v660 = vpop.xlane.xlu0 %659
        %661 = vadd.xlane.f32.xlu0 %v638
        %v662 = vpop.xlane.xlu0 %661
        %663 = vadd.xlane.f32.xlu0 %v639
        %v664 = vpop.xlane.xlu0 %663
        %665 = vadd.xlane.f32.xlu0 %v640
        %v666 = vpop.xlane.xlu0 %665
        %v667 = vmul.f32 %v642, %v614
        %v668 = vmul.f32 %v644, %v614
        %v669 = vmul.f32 %v646, %v614
        %v670 = vmul.f32 %v648, %v614
        %v671 = vmul.f32 %v650, %v614
        %v672 = vmul.f32 %v652, %v614
        %v673 = vmul.f32 %v654, %v614
        %v674 = vmul.f32 %v656, %v614
        %v675 = vmul.f32 %v658, %v614
        %v676 = vmul.f32 %v660, %v614
        %v677 = vmul.f32 %v662, %v614
        %v678 = vmul.f32 %v664, %v614
        %v679 = vmul.f32 %v666, %v614
        %v680 = vmul.f32 %v615, %v615
        %v681 = vmul.f32 %v616, %v616
        %v682 = vmul.f32 %v617, %v617
        %v683 = vmul.f32 %v618, %v618
        %v684 = vmul.f32 %v619, %v619
        %v685 = vmul.f32 %v620, %v620
        %v686 = vmul.f32 %v621, %v621
        %v687 = vmul.f32 %v622, %v622
        %v688 = vmul.f32 %v623, %v623
        %v689 = vmul.f32 %v624, %v624
        %v690 = vmul.f32 %v625, %v625
        %v691 = vmul.f32 %v626, %v626
        %v692 = vmul.f32 %v627, %v627
        %v693 = vsub.f32 %v667, %v680
        %v694 = vsub.f32 %v668, %v681
        %v695 = vsub.f32 %v669, %v682
        %v696 = vsub.f32 %v670, %v683
        %v697 = vsub.f32 %v671, %v684
        %v698 = vsub.f32 %v672, %v685
        %v699 = vsub.f32 %v673, %v686
        %v700 = vsub.f32 %v674, %v687
        %v701 = vsub.f32 %v675, %v688
        %v702 = vsub.f32 %v676, %v689
        %v703 = vsub.f32 %v677, %v690
        %v704 = vsub.f32 %v678, %v691
        %v705 = vsub.f32 %v679, %v692
        %v706 = vmax.f32 %v693, 0.0
        %v707 = vmax.f32 %v694, 0.0
        %v708 = vmax.f32 %v695, 0.0
        %v709 = vmax.f32 %v696, 0.0
        %v710 = vmax.f32 %v697, 0.0
        %v711 = vmax.f32 %v698, 0.0
        %v712 = vmax.f32 %v699, 0.0
        %v713 = vmax.f32 %v700, 0.0
        %v714 = vmax.f32 %v701, 0.0
        %v715 = vmax.f32 %v702, 0.0
        %v716 = vmax.f32 %v703, 0.0
        %v717 = vmax.f32 %v704, 0.0
        %v718 = vmax.f32 %v705, 0.0
        %v719 = vsub.f32 %v575, %v615
        %v720 = vsub.f32 %v576, %v616
        %v721 = vsub.f32 %v577, %v617
        %v722 = vsub.f32 %v578, %v618
        %v723 = vsub.f32 %v579, %v619
        %v724 = vsub.f32 %v580, %v620
        %v725 = vsub.f32 %v581, %v621
        %v726 = vsub.f32 %v582, %v622
        %v727 = vsub.f32 %v583, %v623
        %v728 = vsub.f32 %v584, %v624
        %v729 = vsub.f32 %v585, %v625
        %v730 = vsub.f32 %v586, %v626
        %v731 = vsub.f32 %v587, %v627
        %v732 = vadd.f32 %v706, 1e-12
        %v733 = vadd.f32 %v707, 1e-12
        %v734 = vadd.f32 %v708, 1e-12
        %v735 = vadd.f32 %v709, 1e-12
        %v736 = vadd.f32 %v710, 1e-12
        %v737 = vadd.f32 %v711, 1e-12
        %v738 = vadd.f32 %v712, 1e-12
        %v739 = vadd.f32 %v713, 1e-12
        %v740 = vadd.f32 %v714, 1e-12
        %v741 = vadd.f32 %v715, 1e-12
        %v742 = vadd.f32 %v716, 1e-12
        %v743 = vadd.f32 %v717, 1e-12
        %v744 = vadd.f32 %v718, 1e-12
        %v745 = vrsqrt.pop %v732
        %v746 = vrsqrt.pop %v733
        %v747 = vrsqrt.pop %v734
        %v748 = vrsqrt.pop %v735
        %v749 = vrsqrt.pop %v736
        %v750 = vrsqrt.pop %v737
        %v751 = vrsqrt.pop %v738
        %v752 = vrsqrt.pop %v739
        %v753 = vrsqrt.pop %v740
        %v754 = vrsqrt.pop %v741
        %v755 = vrsqrt.pop %v742
        %v756 = vrsqrt.pop %v743
        %v757 = vrsqrt.pop %v744
        %v758 = vmul.f32 %v719, %v745
        %v759 = vmul.f32 %v720, %v746
        %v760 = vmul.f32 %v721, %v747
        %v761 = vmul.f32 %v722, %v748
        %v762 = vmul.f32 %v723, %v749
        %v763 = vmul.f32 %v724, %v750
        %v764 = vmul.f32 %v725, %v751
        %v765 = vmul.f32 %v726, %v752
        %v766 = vmul.f32 %v727, %v753
        %v767 = vmul.f32 %v728, %v754
        %v768 = vmul.f32 %v729, %v755
        %v769 = vmul.f32 %v730, %v756
        %v770 = vmul.f32 %v731, %v757
        %v771 = vld [vmem:[%s3 + $0x1] sm:$0x1]
        %v772 = vlaneseq
        %v773 = vshrl.u32 %v772, 7
        %v774 = vsub.s32 0, %v773
        %v775 = vrot.slane %v771, %v774
        %v776 = vmul.f32 %v758, %v775
        %v777 = vmul.f32 %v759, %v775
        %v778 = vmul.f32 %v760, %v775
        %v779 = vmul.f32 %v761, %v775
        %v780 = vmul.f32 %v762, %v775
        %v781 = vmul.f32 %v763, %v775
        %v782 = vmul.f32 %v764, %v775
        %v783 = vmul.f32 %v765, %v775
        %v784 = vmul.f32 %v766, %v775
        %v785 = vmul.f32 %v767, %v775
        %v786 = vmul.f32 %v768, %v775
        %v787 = vmul.f32 %v769, %v775
        %v788 = vmul.f32 %v770, %v775
        %v789 = vld [vmem:[%s3 + $0x2] sm:$0x1]
        %v790 = vlaneseq
        %v791 = vshrl.u32 %v790, 7
        %v792 = vsub.s32 0, %v791
        %v793 = vrot.slane %v789, %v792
        %v794 = vadd.f32 %v776, %v793
        %v795 = vadd.f32 %v777, %v793
        %v796 = vadd.f32 %v778, %v793
        %v797 = vadd.f32 %v779, %v793
        %v798 = vadd.f32 %v780, %v793
        %v799 = vadd.f32 %v781, %v793
        %v800 = vadd.f32 %v782, %v793
        %v801 = vadd.f32 %v783, %v793
        %v802 = vadd.f32 %v784, %v793
        %v803 = vadd.f32 %v785, %v793
        %v804 = vadd.f32 %v786, %v793
        %v805 = vadd.f32 %v787, %v793
        %v806 = vadd.f32 %v788, %v793
        %807 = vst [vmem:[%s283] sm:$0xff] %v794
        %808 = vst [vmem:[%s283 + $0x8] sm:$0xff] %v795
        %809 = vst [vmem:[%s283 + $0x10] sm:$0xff] %v796
        %810 = vst [vmem:[%s283 + $0x18] sm:$0xff] %v797
        %811 = vst [vmem:[%s283 + $0x20] sm:$0xff] %v798
        %812 = vst [vmem:[%s283 + $0x28] sm:$0xff] %v799
        %813 = vst [vmem:[%s283 + $0x30] sm:$0xff] %v800
        %814 = vst [vmem:[%s283 + $0x38] sm:$0xff] %v801
        %815 = vst [vmem:[%s283 + $0x40] sm:$0xff] %v802
        %816 = vst [vmem:[%s283 + $0x48] sm:$0xff] %v803
        %817 = vst [vmem:[%s283 + $0x50] sm:$0xff] %v804
        %818 = vst [vmem:[%s283 + $0x58] sm:$0xff] %v805
        %819 = vst [vmem:[%s283 + $0x60] sm:$0xff] %v806
        %s820 = sand.u32 %s126, 1
        %s821 = scalar_lea.sflag [#allocation4], %s820
        %s822 = sand.u32 %s126, 1
        %s823 = smul.addr %s822, 104
        %s824 = scalar_lea.vmem [#allocation8], %s823
        // Predicated region
        $region49: #{tpu_custom_call.1} parent=35 // pred_check
          %p825 = pneg %p136
        $region50: #{tpu_custom_call.1} parent=35 // pred_check_branch
          %827 = sbr.rel (%p825) target = $region52
        $region51: #{tpu_custom_call.1} parent=35 // pred_region
          %s828 = smul.u32 13, %s24
          %s829 = ssub.s32 25, %s828
          %p830 = scmp.lt.s32.totalorder %s829, 13
          %s831 = scalar_select %p830, %s829, 13
          %s832 = smul.u32 128, %s831
          %s834 = ssub.s32 1664, %s832
          %835 = vsyncadd %s821, %s834
          %p836 = scmp.ne.s32.totalorder 0, %s832
          %s837 = smul.addr %s828, 128
          %s838 = scalar_lea.hbm %s4, %s837
          %s839 = smul.u32 8, %s831
          %s840 = sshll.u32 %s824, 4
          %s841 = int_to_ptr.vmem [resolvable:$true] %s840
          %s842 = sshll.u32 %s839, 4
          %846 = dma.vmem_to_hbm [thread:$0]  (%p836), %s841, %s842, %s838, %s821, 128, 128, 8
        $region52: #{tpu_custom_call.1} parent=35 // pred_fallthru
          _
      $region36: #{tpu_custom_call.1} parent=5 // pred_fallthru
        _
      %p847 = scmp.le.s32.totalorder 2, %s19
      // Predicated region
      $region53: #{tpu_custom_call.1} parent=5 // pred_check
        %p848 = pneg %p847
      $region54: #{tpu_custom_call.1} parent=5 // pred_check_branch
        %850 = sbr.rel (%p848) target = $region56
      $region55: #{tpu_custom_call.1} parent=5 // pred_region
        %s851 = ssub.s32 %s19, 2
        // Predicated region
        $region57: #{tpu_custom_call.1} parent=55 // pred_check
          %p852 = pneg %p142
        $region58: #{tpu_custom_call.1} parent=55 // pred_check_branch
          %854 = sbr.rel (%p852) target = $region60
        $region59: #{tpu_custom_call.1} parent=55 // pred_region
          %s855 = sand.u32 %s127, 1
          %s856 = scalar_lea.sflag [#allocation4], %s855
          %s857 = sand.u32 %s127, 1
          %s858 = smul.addr %s857, 104
          %s859 = scalar_lea.vmem [#allocation8], %s858
          %860 = dma.done %s856, 1664
        $region60: #{tpu_custom_call.1} parent=55 // pred_fallthru
          _
      $region56: #{tpu_custom_call.1} parent=5 // pred_fallthru
        _
    $region6: #{tpu_custom_call.1} parent=1 // loop_footer
      %s23 = sadd.s32 1, %s19
    $region7: #{tpu_custom_call.1} parent=1 // loop_footer_branch
      %18 = sbr.rel target = $region3
    $region8: #{tpu_custom_call.1} parent=1 // loop_exit
      _
    %861 = vsyncpa [#allocation3], 1
    %s862 = scalar_lea.sflag [#allocation3], 1
    %863 = vsyncpa %s862, 1
    %864 = vsyncpa [#allocation6], 1
    %s865 = scalar_lea.sflag [#allocation6], 1
    %866 = vsyncpa %s865, 1
    %867 = vsyncpa [#allocation4], 1
    %s868 = scalar_lea.sflag [#allocation4], 1
    %869 = vsyncpa %s868, 1

</llo_original>
